<compile_context>
chip_gen: v7x
topology: tpu7x:2x2x1
jax: 0.10.0
libtpu: 0.0.40
codegen_flags: <defaults>
</compile_context>

<pallas_src>
import jax
import jax.numpy as jnp
import numpy as np
from jax.experimental import pallas as pl
from jax.experimental.pallas import tpu as pltpu


def _lrelu(v):
    # nn.LeakyReLU(0.2) -- slope from the PyTorch module spec.
    return jnp.where(v >= 0, v, 0.2 * v)


# ---------------------------------------------------------------------------
# Kernel: lane-dense activations; each conv is a single bf16 MXU matmul.
# ---------------------------------------------------------------------------
def _make_resblock_kernel(R, H):
    """Build the kernel body for R = N*H rows of H-row images."""

    def kernel(x_ref, w1_ref, b1_ref, w2_ref, b2_ref, ws_ref, bs_ref, o_ref):
        # x_ref : (R, W*Ci)        bf16 lane-dense activations
        # w1_ref: (3*W*Ci, W*Co)   bf16 stacked banded 3x3 weights (kh=-1,0,+1)
        # w2_ref: (3*W*Co, W*Co)   bf16
        # ws_ref: (W*Ci,  W*Co)    bf16 block-diagonal 1x1 shortcut weights
        # b*_ref: (1, W*Co)        f32 biases pre-broadcast along W
        # o_ref : (R, W*Co)        bf16 output
        row = jax.lax.broadcasted_iota(jnp.int32, (R, 1), 0) % H
        is_top = row == 0        # first row of each image -> zero pad above
        is_bot = row == H - 1    # last row of each image  -> zero pad below

        x_bf = x_ref[...]        # bf16

        def conv3x3(v, w_ref, b_ref):
            # v: (R, W*C) f32.  Row halo via XLU roll; image-boundary rows are
            # zeroed with a select.  The three kh taps are stacked along K and
            # contracted in a single bf16 MXU matmul with f32 accumulation.
            up = jnp.where(is_top, 0.0, pltpu.roll(v, shift=1, axis=0))
            dn = jnp.where(is_bot, 0.0, pltpu.roll(v, shift=R - 1, axis=0))
            stk = jnp.concatenate([up, v, dn], axis=1).astype(jnp.bfloat16)
            acc = jnp.dot(stk, w_ref[...], preferred_element_type=jnp.float32)
            return acc + b_ref[...]

        # ---- shortcut: 1x1 conv == one banded matmul (K = W*Ci) ----
        short = jnp.dot(x_bf, ws_ref[...],
                        preferred_element_type=jnp.float32) + bs_ref[...]

        # ---- long path: LReLU -> conv3x3 -> LReLU -> conv3x3 -> LReLU ----
        h = _lrelu(x_bf.astype(jnp.float32))
        h = _lrelu(conv3x3(h, w1_ref, b1_ref))
        h = _lrelu(conv3x3(h, w2_ref, b2_ref))

        # Lane-dense (R, W*Co) bf16 store (full 128-lane vregs, unmasked vst).
        o_ref[...] = (short + h).astype(o_ref.dtype)

    return kernel


# ---------------------------------------------------------------------------
# One-time parameter preparation (hoisted out of the per-call path).
# ---------------------------------------------------------------------------
def _banded_conv3x3(w_hwio, W):
    """HWIO (3,3,Cin,Cout) -> (3, W*Cin, W*Cout): one banded matrix per kh tap.

    B[kh, wi*Cin+ci, wo*Cout+co] = w[kh, kw, ci, co] where wi == wo + kw - 1,
    else 0.  Missing band entries encode the SAME zero padding along W.
    """
    KH, KW, Cin, Cout = w_hwio.shape
    wi = np.arange(W)[None, :, None]
    wo = np.arange(W)[None, None, :]
    kw = np.arange(KW)[:, None, None]
    ind = jnp.asarray((wi == wo + kw - (KW // 2)).astype(np.float32))  # (KW,W,W)
    B = jnp.einsum("kio,hkcd->hicod", ind, w_hwio.astype(jnp.float32))
    return B.reshape(KH, W * Cin, W * Cout)


def _banded_conv1x1(w_io, W):
    """(Cin,Cout) -> block-diagonal (W*Cin, W*Cout) for the 1x1 shortcut conv."""
    Cin, Cout = w_io.shape
    eye = jnp.eye(W, dtype=jnp.float32)
    B = jnp.einsum("io,cd->icod", eye, w_io.astype(jnp.float32))
    return B.reshape(W * Cin, W * Cout)


def prepare_resblock_params(w1, b1, w2, b2, ws, bs, W):
    """Precompute banded+stacked bf16 weights and broadcast f32 biases (once)."""
    Ci, Co = w1.shape[2], w1.shape[3]
    # Stack the 3 kh taps along K: (3, W*Cin, W*Co) -> (3*W*Cin, W*Co).
    W1 = _banded_conv3x3(w1, W).reshape(3 * W * Ci, W * Co).astype(jnp.bfloat16)
    W2 = _banded_conv3x3(w2, W).reshape(3 * W * Co, W * Co).astype(jnp.bfloat16)
    Ws = _banded_conv1x1(ws, W).astype(jnp.bfloat16)
    b1w = jnp.tile(b1.reshape(1, Co).astype(jnp.float32), (1, W))
    b2w = jnp.tile(b2.reshape(1, Co).astype(jnp.float32), (1, W))
    bsw = jnp.tile(bs.reshape(1, Co).astype(jnp.float32), (1, W))
    return dict(W1=W1, b1=b1w, W2=W2, b2=b2w, Ws=Ws, bs=bsw)


# ---------------------------------------------------------------------------
# Jitted forward: reshape -> pallas_call -> reshape.
# ---------------------------------------------------------------------------
@jax.jit
def resblock_pallas(x_nhwc, params):
    N, H, W, Ci = x_nhwc.shape
    Co = params["b1"].shape[1] // W
    R = N * H

    # Lane-dense bf16 view of the activations (contiguous reshape + cast).
    x2 = x_nhwc.reshape(R, W * Ci).astype(jnp.bfloat16)

    flops = 2 * R * (W * Ci) * (W * Co)           # 1x1 shortcut
    flops += 2 * R * (3 * W * Ci) * (W * Co)      # conv1 (stacked K)
    flops += 2 * R * (3 * W * Co) * (W * Co)      # conv2 (stacked K)
    bytes_accessed = (
        x2.size * x2.dtype.itemsize
        + sum(int(np.prod(p.shape)) * p.dtype.itemsize for p in params.values())
        + R * W * Co * 2)                         # bf16 output

    vmem = pl.BlockSpec(memory_space=pltpu.MemorySpace.VMEM)
    out2 = pl.pallas_call(
        _make_resblock_kernel(R, H),
        out_shape=jax.ShapeDtypeStruct((R, W * Co), jnp.bfloat16),
        in_specs=[vmem] * 7,
        out_specs=vmem,
        cost_estimate=pl.CostEstimate(
            flops=flops, transcendentals=0, bytes_accessed=bytes_accessed),
    )(x2, params["W1"], params["b1"], params["W2"], params["b2"],
      params["Ws"], params["bs"])

    return out2.reshape(N, H, W, Co)


# ---------------------------------------------------------------------------
# Pure-JAX f32 reference (XLA convs) for correctness checking.
# ---------------------------------------------------------------------------
def resblock_reference(x_nhwc, w1, b1, w2, b2, ws, bs):
    def conv(v, w, b):
        y = jax.lax.conv_general_dilated(
            v, w, window_strides=(1, 1), padding="SAME",
            dimension_numbers=("NHWC", "HWIO", "NHWC"))
        return y + b.reshape(1, 1, 1, -1)

    short = conv(x_nhwc, ws.reshape(1, 1, *ws.shape), bs)
    lng = _lrelu(conv(_lrelu(conv(_lrelu(x_nhwc), w1, b1)), w2, b2))
    return short + lng


if __name__ == "__main__":
    # Small shapes: batch=2, in_ch=4, out_ch=8, spatial 16x16, stride=1.
    N, Ci, Co, H, W = 2, 4, 8, 16, 16

    key = jax.random.PRNGKey(0)
    kx, k1, kb1, k2, kb2, ks, kbs = jax.random.split(key, 7)

    # PyTorch-style NCHW input, transposed to NHWC for the kernel.
    x_nchw = jax.random.normal(kx, (N, Ci, H, W), jnp.float32)
    x_nhwc = jnp.transpose(x_nchw, (0, 2, 3, 1))

    # Deterministic synthetic parameters (HWIO layout).
    w1 = 0.1 * jax.random.normal(k1, (3, 3, Ci, Co), jnp.float32)
    b1 = 0.1 * jax.random.normal(kb1, (1, Co), jnp.float32)
    w2 = 0.1 * jax.random.normal(k2, (3, 3, Co, Co), jnp.float32)
    b2 = 0.1 * jax.random.normal(kb2, (1, Co), jnp.float32)
    ws = 0.1 * jax.random.normal(ks, (Ci, Co), jnp.float32)
    bs = 0.1 * jax.random.normal(kbs, (1, Co), jnp.float32)

    # One-time prep (not on the steady-state forward path).
    params = prepare_resblock_params(w1, b1, w2, b2, ws, bs, W)

    out = jax.block_until_ready(resblock_pallas(x_nhwc, params))
    ref = jax.block_until_ready(
        resblock_reference(x_nhwc, w1, b1, w2, b2, ws, bs))

    assert out.shape == (N, H, W, Co), out.shape
    # bf16 operands + bf16 output => loosened tolerance; f32 MXU accumulation
    # keeps the contraction error bounded.
    np.testing.assert_allclose(np.asarray(out, dtype=np.float32),
                               np.asarray(ref), rtol=3e-2, atol=3e-2)
    print("KERNEL_OK")
</pallas_src>

<mosaic_0001>
module attributes {stable_mosaic.version = 11 : i64} {
  func.func @kernel(%arg0: memref<32x64xbf16, #tpu.memory_space<vmem>>, %arg1: memref<192x128xbf16, #tpu.memory_space<vmem>>, %arg2: memref<1x128xf32, #tpu.memory_space<vmem>>, %arg3: memref<384x128xbf16, #tpu.memory_space<vmem>>, %arg4: memref<1x128xf32, #tpu.memory_space<vmem>>, %arg5: memref<64x128xbf16, #tpu.memory_space<vmem>>, %arg6: memref<1x128xf32, #tpu.memory_space<vmem>>, %arg7: memref<32x128xbf16, #tpu.memory_space<vmem>>) attributes {dimension_semantics = [], scalar_prefetch = 0 : i64, scratch_operands = 0 : i64, tpu.core_type = #tpu.core_type<tc>} {
    %0 = tpu.iota {dimensions = array<i32: 0>} : vector<32x1xi32>
    %c16_i32 = arith.constant 16 : i32
    %c0_i32 = arith.constant 0 : i32
    %1 = arith.cmpi eq, %c16_i32, %c0_i32 : i32
    %c1_i32 = arith.constant 1 : i32
    %2 = arith.select %1, %c1_i32, %c16_i32 : i32
    %3 = vector.broadcast %2 : i32 to vector<32x1xi32>
    %4 = arith.remsi %0, %3 : vector<32x1xi32>
    %c0_i32_0 = arith.constant 0 : i32
    %5 = vector.broadcast %c0_i32_0 : i32 to vector<32x1xi32>
    %6 = arith.cmpi ne, %4, %5 : vector<32x1xi32>
    %c0_i32_1 = arith.constant 0 : i32
    %7 = vector.broadcast %c0_i32_1 : i32 to vector<32x1xi32>
    %8 = arith.cmpi slt, %4, %7 : vector<32x1xi32>
    %c0_i32_2 = arith.constant 0 : i32
    %9 = arith.cmpi slt, %2, %c0_i32_2 : i32
    %10 = vector.broadcast %9 : i1 to vector<32x1xi1>
    %11 = vector.broadcast %10 : vector<32x1xi1> to vector<32x1xi1>
    %12 = arith.xori %8, %11 : vector<32x1xi1>
    %13 = arith.andi %12, %6 : vector<32x1xi1>
    %14 = vector.broadcast %2 : i32 to vector<32x1xi32>
    %15 = arith.addi %4, %14 : vector<32x1xi32>
    %16 = arith.select %13, %15, %4 : vector<32x1xi1>, vector<32x1xi32>
    %c0_i32_3 = arith.constant 0 : i32
    %17 = vector.broadcast %c0_i32_3 : i32 to vector<32x1xi32>
    %18 = arith.cmpi eq, %16, %17 : vector<32x1xi32>
    %c15_i32 = arith.constant 15 : i32
    %19 = vector.broadcast %c15_i32 : i32 to vector<32x1xi32>
    %20 = arith.cmpi eq, %16, %19 : vector<32x1xi32>
    %c0 = arith.constant 0 : index
    %c0_4 = arith.constant 0 : index
    %21 = vector.load %arg0[%c0, %c0_4] : memref<32x64xbf16, #tpu.memory_space<vmem>>, vector<32x64xbf16>
    %c0_5 = arith.constant 0 : index
    %c0_6 = arith.constant 0 : index
    %22 = vector.load %arg5[%c0_5, %c0_6] : memref<64x128xbf16, #tpu.memory_space<vmem>>, vector<64x128xbf16>
    %cst = arith.constant dense<0.000000e+00> : vector<32x128xf32>
    %23 = tpu.matmul %21, %22, %cst {dimension_numbers = #tpu.dot_dimension_numbers<[1], [0], [0], [1], [0, 0, 1, 1], [], []>} : vector<32x64xbf16>, vector<64x128xbf16>, vector<32x128xf32> -> vector<32x128xf32>
    %c0_7 = arith.constant 0 : index
    %c0_8 = arith.constant 0 : index
    %24 = vector.load %arg6[%c0_7, %c0_8] : memref<1x128xf32, #tpu.memory_space<vmem>>, vector<1x128xf32>
    %25 = vector.broadcast %24 : vector<1x128xf32> to vector<32x128xf32>
    %26 = arith.addf %23, %25 : vector<32x128xf32>
    %27 = arith.extf %21 : vector<32x64xbf16> to vector<32x64xf32>
    %cst_9 = arith.constant 0.000000e+00 : f32
    %28 = vector.broadcast %cst_9 : f32 to vector<32x64xf32>
    %29 = arith.cmpf oge, %27, %28 : vector<32x64xf32>
    %cst_10 = arith.constant 2.000000e-01 : f32
    %30 = vector.broadcast %cst_10 : f32 to vector<32x64xf32>
    %31 = arith.mulf %30, %27 : vector<32x64xf32>
    %32 = arith.select %29, %27, %31 : vector<32x64xi1>, vector<32x64xf32>
    %c1_i32_11 = arith.constant 1 : i32
    %33 = tpu.dynamic_rotate %32 by %c1_i32_11 dim 0 : vector<32x64xf32>, i32 -> vector<32x64xf32>
    %cst_12 = arith.constant 0.000000e+00 : f32
    %34 = vector.shape_cast %18 : vector<32x1xi1> to vector<32x1xi1>
    %35 = vector.broadcast %34 : vector<32x1xi1> to vector<32x64xi1>
    %36 = vector.broadcast %cst_12 : f32 to vector<32x64xf32>
    %37 = arith.select %35, %36, %33 : vector<32x64xi1>, vector<32x64xf32>
    %c31_i32 = arith.constant 31 : i32
    %38 = tpu.dynamic_rotate %32 by %c31_i32 dim 0 : vector<32x64xf32>, i32 -> vector<32x64xf32>
    %cst_13 = arith.constant 0.000000e+00 : f32
    %39 = vector.shape_cast %20 : vector<32x1xi1> to vector<32x1xi1>
    %40 = vector.broadcast %39 : vector<32x1xi1> to vector<32x64xi1>
    %41 = vector.broadcast %cst_13 : f32 to vector<32x64xf32>
    %42 = arith.select %40, %41, %38 : vector<32x64xi1>, vector<32x64xf32>
    %43 = tpu.concatenate %37, %32, %42 in 1 : vector<32x64xf32>, vector<32x64xf32>, vector<32x64xf32> -> vector<32x192xf32>
    %44 = arith.truncf %43 : vector<32x192xf32> to vector<32x192xbf16>
    %c0_14 = arith.constant 0 : index
    %c0_15 = arith.constant 0 : index
    %45 = vector.load %arg1[%c0_14, %c0_15] : memref<192x128xbf16, #tpu.memory_space<vmem>>, vector<192x128xbf16>
    %cst_16 = arith.constant dense<0.000000e+00> : vector<32x128xf32>
    %46 = tpu.matmul %44, %45, %cst_16 {dimension_numbers = #tpu.dot_dimension_numbers<[1], [0], [0], [1], [0, 0, 1, 1], [], []>} : vector<32x192xbf16>, vector<192x128xbf16>, vector<32x128xf32> -> vector<32x128xf32>
    %c0_17 = arith.constant 0 : index
    %c0_18 = arith.constant 0 : index
    %47 = vector.load %arg2[%c0_17, %c0_18] : memref<1x128xf32, #tpu.memory_space<vmem>>, vector<1x128xf32>
    %48 = vector.broadcast %47 : vector<1x128xf32> to vector<32x128xf32>
    %49 = arith.addf %46, %48 : vector<32x128xf32>
    %cst_19 = arith.constant 0.000000e+00 : f32
    %50 = vector.broadcast %cst_19 : f32 to vector<32x128xf32>
    %51 = arith.cmpf oge, %49, %50 : vector<32x128xf32>
    %cst_20 = arith.constant 2.000000e-01 : f32
    %52 = vector.broadcast %cst_20 : f32 to vector<32x128xf32>
    %53 = arith.mulf %52, %49 : vector<32x128xf32>
    %54 = arith.select %51, %49, %53 : vector<32x128xi1>, vector<32x128xf32>
    %c1_i32_21 = arith.constant 1 : i32
    %55 = tpu.dynamic_rotate %54 by %c1_i32_21 dim 0 : vector<32x128xf32>, i32 -> vector<32x128xf32>
    %cst_22 = arith.constant 0.000000e+00 : f32
    %56 = vector.shape_cast %18 : vector<32x1xi1> to vector<32x1xi1>
    %57 = vector.broadcast %56 : vector<32x1xi1> to vector<32x128xi1>
    %58 = vector.broadcast %cst_22 : f32 to vector<32x128xf32>
    %59 = arith.select %57, %58, %55 : vector<32x128xi1>, vector<32x128xf32>
    %c31_i32_23 = arith.constant 31 : i32
    %60 = tpu.dynamic_rotate %54 by %c31_i32_23 dim 0 : vector<32x128xf32>, i32 -> vector<32x128xf32>
    %cst_24 = arith.constant 0.000000e+00 : f32
    %61 = vector.shape_cast %20 : vector<32x1xi1> to vector<32x1xi1>
    %62 = vector.broadcast %61 : vector<32x1xi1> to vector<32x128xi1>
    %63 = vector.broadcast %cst_24 : f32 to vector<32x128xf32>
    %64 = arith.select %62, %63, %60 : vector<32x128xi1>, vector<32x128xf32>
    %65 = tpu.concatenate %59, %54, %64 in 1 : vector<32x128xf32>, vector<32x128xf32>, vector<32x128xf32> -> vector<32x384xf32>
    %66 = arith.truncf %65 : vector<32x384xf32> to vector<32x384xbf16>
    %c0_25 = arith.constant 0 : index
    %c0_26 = arith.constant 0 : index
    %67 = vector.load %arg3[%c0_25, %c0_26] : memref<384x128xbf16, #tpu.memory_space<vmem>>, vector<384x128xbf16>
    %cst_27 = arith.constant dense<0.000000e+00> : vector<32x128xf32>
    %68 = tpu.matmul %66, %67, %cst_27 {dimension_numbers = #tpu.dot_dimension_numbers<[1], [0], [0], [1], [0, 0, 1, 1], [], []>} : vector<32x384xbf16>, vector<384x128xbf16>, vector<32x128xf32> -> vector<32x128xf32>
    %c0_28 = arith.constant 0 : index
    %c0_29 = arith.constant 0 : index
    %69 = vector.load %arg4[%c0_28, %c0_29] : memref<1x128xf32, #tpu.memory_space<vmem>>, vector<1x128xf32>
    %70 = vector.broadcast %69 : vector<1x128xf32> to vector<32x128xf32>
    %71 = arith.addf %68, %70 : vector<32x128xf32>
    %cst_30 = arith.constant 0.000000e+00 : f32
    %72 = vector.broadcast %cst_30 : f32 to vector<32x128xf32>
    %73 = arith.cmpf oge, %71, %72 : vector<32x128xf32>
    %cst_31 = arith.constant 2.000000e-01 : f32
    %74 = vector.broadcast %cst_31 : f32 to vector<32x128xf32>
    %75 = arith.mulf %74, %71 : vector<32x128xf32>
    %76 = arith.select %73, %71, %75 : vector<32x128xi1>, vector<32x128xf32>
    %77 = arith.addf %26, %76 : vector<32x128xf32>
    %78 = arith.truncf %77 : vector<32x128xf32> to vector<32x128xbf16>
    %c0_32 = arith.constant 0 : index
    %c0_33 = arith.constant 0 : index
    %79 = vector.load %arg7[%c0_32, %c0_33] : memref<32x128xbf16, #tpu.memory_space<vmem>>, vector<32x128xbf16>
    tpu.vector_store %arg7[%c0_32, %c0_33], %78 {strides = array<i32>} : memref<32x128xbf16, #tpu.memory_space<vmem>>, vector<32x128xbf16>,
    return
  }
}

</mosaic_0001>

<llo_original>
// kernel: resblock_pallas.1
$region0: #{resblock_pallas.1}
  #allocation0 [shape = 'u32[]', space=smem, size = 0x4, offset = 0x4, fixed_abs, tag = 'smem constant byte address 0x4 - core index']
  #allocation1 [shape = 'u32[144,128]{1,0:T(1,128)}', space=vmem, size = 0x12000, scoped, tag = 'internal scratch']
  %s0 = inlined_call_operand.vmem [shape: bf16[32,64], index: 0, kind: input, shape index: {}]
  %s1 = inlined_call_operand.vmem [shape: bf16[192,128], index: 1, kind: input, shape index: {}]
  %s2 = inlined_call_operand.vmem [shape: f32[1,128], index: 2, kind: input, shape index: {}]
  %s3 = inlined_call_operand.vmem [shape: bf16[384,128], index: 3, kind: input, shape index: {}]
  %s4 = inlined_call_operand.vmem [shape: f32[1,128], index: 4, kind: input, shape index: {}]
  %s5 = inlined_call_operand.vmem [shape: bf16[64,128], index: 5, kind: input, shape index: {}]
  %s6 = inlined_call_operand.vmem [shape: f32[1,128], index: 6, kind: input, shape index: {}]
  %s7 = inlined_call_operand.vmem [shape: bf16[32,128], index: 7, kind: output, shape index: {}]
  %s8 = sld [smem:[#allocation0]]
  $region38: #{resblock_pallas.1} parent=0
    _
  %s10 = ssub.s32 1, %s8
  %s11 = scalar_select 0, %s10, %s8
  // Predicated region
  $region2: #{resblock_pallas.1} parent=0 // pred_check
    _
  $region3: #{resblock_pallas.1} parent=0 // pred_check_branch
    %13 = sbr.rel (0) target = $region5
  $region4: #{resblock_pallas.1} parent=0 // pred_region
    _
  $region5: #{resblock_pallas.1} parent=0 // pred_fallthru
    _
  // Predicated region
  $region6: #{resblock_pallas.1} parent=0 // pred_check
    _
  $region7: #{resblock_pallas.1} parent=0 // pred_check_branch
    %15 = sbr.rel (0) target = $region9
  $region8: #{resblock_pallas.1} parent=0 // pred_region
    _
  $region9: #{resblock_pallas.1} parent=0 // pred_fallthru
    _
  // Predicated region
  $region10: #{resblock_pallas.1} parent=0 // pred_check
    _
  $region11: #{resblock_pallas.1} parent=0 // pred_check_branch
    %17 = sbr.rel (0) target = $region13
  $region12: #{resblock_pallas.1} parent=0 // pred_region
    _
  $region13: #{resblock_pallas.1} parent=0 // pred_fallthru
    _
  // Predicated region
  $region14: #{resblock_pallas.1} parent=0 // pred_check
    _
  $region15: #{resblock_pallas.1} parent=0 // pred_check_branch
    %19 = sbr.rel (0) target = $region17
  $region16: #{resblock_pallas.1} parent=0 // pred_region
    _
  $region17: #{resblock_pallas.1} parent=0 // pred_fallthru
    _
  // Predicated region
  $region18: #{resblock_pallas.1} parent=0 // pred_check
    _
  $region19: #{resblock_pallas.1} parent=0 // pred_check_branch
    %21 = sbr.rel (0) target = $region21
  $region20: #{resblock_pallas.1} parent=0 // pred_region
    _
  $region21: #{resblock_pallas.1} parent=0 // pred_fallthru
    _
  // Predicated region
  $region22: #{resblock_pallas.1} parent=0 // pred_check
    _
  $region23: #{resblock_pallas.1} parent=0 // pred_check_branch
    %23 = sbr.rel (0) target = $region25
  $region24: #{resblock_pallas.1} parent=0 // pred_region
    _
  $region25: #{resblock_pallas.1} parent=0 // pred_fallthru
    _
  // Predicated region
  $region26: #{resblock_pallas.1} parent=0 // pred_check
    _
  $region27: #{resblock_pallas.1} parent=0 // pred_check_branch
    %25 = sbr.rel (0) target = $region29
  $region28: #{resblock_pallas.1} parent=0 // pred_region
    _
  $region29: #{resblock_pallas.1} parent=0 // pred_fallthru
    _
  %v27 = vlaneseq
  %v28 = vshrl.u32 %v27, 7
  %v29 = vadd.s32 %v28, 8
  %v30 = vadd.s32 %v28, 16
  %v31 = vadd.s32 %v28, 24
  %vm32 = vcmp.lt.s32.totalorder %v28, 0
  %v33 = vsub.s32 0, %v28
  %v34 = vsel %vm32, %v33, %v28
  %v35 = vshrl.u32 %v34, 4
  %v36 = vand.u32 %v34, 15
  %v37 = vsub.s32 0, %v36
  %v38 = vsel %vm32, %v37, %v36
  %vm39 = vcmp.lt.s32.totalorder %v29, 0
  %v40 = vsub.s32 0, %v29
  %v41 = vsel %vm39, %v40, %v29
  %v42 = vshrl.u32 %v41, 4
  %v43 = vand.u32 %v41, 15
  %v44 = vsub.s32 0, %v43
  %v45 = vsel %vm39, %v44, %v43
  %vm46 = vcmp.lt.s32.totalorder %v30, 0
  %v47 = vsub.s32 0, %v30
  %v48 = vsel %vm46, %v47, %v30
  %v49 = vshrl.u32 %v48, 4
  %v50 = vand.u32 %v48, 15
  %v51 = vsub.s32 0, %v50
  %v52 = vsel %vm46, %v51, %v50
  %vm53 = vcmp.lt.s32.totalorder %v31, 0
  %v54 = vsub.s32 0, %v31
  %v55 = vsel %vm53, %v54, %v31
  %v56 = vshrl.u32 %v55, 4
  %v57 = vand.u32 %v55, 15
  %v58 = vsub.s32 0, %v57
  %v59 = vsel %vm53, %v58, %v57
  %vm60 = vcmp.ne.s32.totalorder %v38, 0
  %vm61 = vcmp.ne.s32.totalorder %v45, 0
  %vm62 = vcmp.ne.s32.totalorder %v52, 0
  %vm63 = vcmp.ne.s32.totalorder %v59, 0
  %vm64 = vcmp.lt.s32.totalorder %v38, 0
  %vm65 = vcmp.lt.s32.totalorder %v45, 0
  %vm66 = vcmp.lt.s32.totalorder %v52, 0
  %vm67 = vcmp.lt.s32.totalorder %v59, 0
  %vm68 = vmand %vm64, %vm60
  %vm69 = vmand %vm65, %vm61
  %vm70 = vmand %vm66, %vm62
  %vm71 = vmand %vm67, %vm63
  %v72 = vadd.s32 %v38, 16
  %v73 = vadd.s32 %v45, 16
  %v74 = vadd.s32 %v52, 16
  %v75 = vadd.s32 %v59, 16
  %v76 = vsel %vm68, %v72, %v38
  %v77 = vsel %vm69, %v73, %v45
  %v78 = vsel %vm70, %v74, %v52
  %v79 = vsel %vm71, %v75, %v59
  %vm80 = vcmp.eq.s32.totalorder %v76, 0
  %vm81 = vcmp.eq.s32.totalorder %v77, 0
  %vm82 = vcmp.eq.s32.totalorder %v78, 0
  %vm83 = vcmp.eq.s32.totalorder %v79, 0
  %vm84 = vcmp.eq.s32.totalorder %v76, 15
  %vm85 = vcmp.eq.s32.totalorder %v77, 15
  %vm86 = vcmp.eq.s32.totalorder %v78, 15
  %vm87 = vcmp.eq.s32.totalorder %v79, 15
  %v88 = vld [vmem:[%s0] sm:$0xf]
  %v89 = vld [vmem:[%s0 + $0x4] sm:$0xf]
  %v90 = vld [vmem:[%s0 + $0x8] sm:$0xf]
  %v91 = vld [vmem:[%s0 + $0xc] sm:$0xf]
  %v92 = vld [vmem:[%s5] sm:$0xf]
  %v93 = vld [vmem:[%s5 + $0x4] sm:$0xf]
  %v94 = vld [vmem:[%s5 + $0x8] sm:$0xf]
  %v95 = vld [vmem:[%s5 + $0xc] sm:$0xf]
  %v96 = vld [vmem:[%s5 + $0x10] sm:$0xf]
  %v97 = vld [vmem:[%s5 + $0x14] sm:$0xf]
  %v98 = vld [vmem:[%s5 + $0x18] sm:$0xf]
  %v99 = vld [vmem:[%s5 + $0x1c] sm:$0xf]
  %v100 = vld [vmem:[%s6] sm:$0x1]
  %v102 = vlaneseq
  %v103 = vshrl.u32 %v102, 7
  %v104 = vsub.s32 0, %v103
  %v105 = vrot.slane %v100, %v104
  %v111 = vunpack.c.l.b16 %v88
  %v112 = vunpack.c.l.b16 %v89
  %v113 = vunpack.c.l.b16 %v90
  %v114 = vunpack.c.l.b16 %v91
  %v115 = vpack.c.b16 %v112, %v111
  %v116 = vpack.c.b16 %v114, %v113
  %v125 = vunpack.c.l.b16 %v92
  %v126 = vunpack.c.l.b16 %v93
  %v127 = vunpack.c.l.b16 %v94
  %v128 = vunpack.c.l.b16 %v95
  %v129 = vunpack.c.l.b16 %v96
  %v130 = vunpack.c.l.b16 %v97
  %v131 = vunpack.c.l.b16 %v98
  %v132 = vunpack.c.l.b16 %v99
  %v133 = vpack.c.b16 %v126, %v125
  %v134 = vpack.c.b16 %v128, %v127
  %v135 = vpack.c.b16 %v130, %v129
  %v136 = vpack.c.b16 %v132, %v131
  %vm141 = vcmask 523264
  %v143 = vsel %vm141, %v115, 0
  %v146 = vsel %vm141, %v116, 0
  %148 = vmatprep.subr.bf16.mxu0 0
  %149 = vmatpush1.bf16.msra.mxu0 %v133
  %150 = vmatprep.subr.bf16.mxu0 0
  %151 = vmatpush1.bf16.msra.mxu0 %v134
  %152 = vmatprep.subr.bf16.mxu0 0
  %153 = vmatpush1.bf16.msra.mxu0 %v135
  %154 = vmatprep.subr.bf16.mxu0 0
  %155 = vmatpush1.bf16.msra.mxu0 %v136
  %156 = vmatprep.subr.bf16.mxu0 0
  %157 = vmatpush1.bf16.msra.mxu0 0
  %158 = vmatprep.subr.bf16.mxu0 0
  %159 = vmatpush1.bf16.msra.mxu0 0
  %160 = vmatprep.subr.bf16.mxu0 0
  %161 = vmatpush1.bf16.msra.mxu0 0
  %162 = vmatprep.subr.bf16.mxu0 0
  %163 = vmatpush1.bf16.msra.mxu0 0
  %164 = vmatprep.subr.bf16.mxu0 0
  %165 = vmatpush1.bf16.msra.mxu0 0
  %166 = vmatprep.subr.bf16.mxu0 0
  %167 = vmatpush1.bf16.msra.mxu0 0
  %168 = vmatprep.subr.bf16.mxu0 0
  %169 = vmatpush1.bf16.msra.mxu0 0
  %170 = vmatprep.subr.bf16.mxu0 0
  %171 = vmatpush1.bf16.msra.mxu0 0
  %172 = vmatprep.subr.bf16.mxu0 0
  %173 = vmatpush1.bf16.msra.mxu0 0
  %174 = vmatprep.subr.bf16.mxu0 0
  %175 = vmatpush1.bf16.msra.mxu0 0
  %176 = vmatprep.subr.bf16.mxu0 0
  %177 = vmatpush1.bf16.msra.mxu0 0
  %178 = vmatprep.subr.bf16.mxu0 0
  %179 = vmatpush1.bf16.msra.mxu0 0
  %180 = vmatprep.mubr.bf16.mxu0 0
  %181 = vmatmul.mubr.bf16.gmra.mrb[0].mxu0 %v143
  %v182 = vpop.f32.mrb[0].mxu0
  %v183 = vadd.f32 %v105, %v182
  %v184 = vpop.f32.mrb[0].mxu0
  %v185 = vpop.f32.mrb[0].mxu0
  %v186 = vadd.f32 %v105, %v185
  %v187 = vpop.f32.mrb[0].mxu0
  %188 = vmatprep.mubr.bf16.mxu0 0
  %189 = vmatmul.mubr.bf16.gmra.mrb[0].mxu0 %v146
  %v190 = vpop.f32.mrb[0].mxu0
  %v191 = vadd.f32 %v105, %v190
  %v192 = vpop.f32.mrb[0].mxu0
  %v193 = vpop.f32.mrb[0].mxu0
  %v194 = vadd.f32 %v105, %v193
  %v195 = vpop.f32.mrb[0].mxu0
  %196 = vdwg.mxu0
  %v197 = vunpack.c.l.bf16 %v88
  %v198 = vunpack.c.l.bf16 %v89
  %v199 = vunpack.c.l.bf16 %v90
  %v200 = vunpack.c.l.bf16 %v91
  %vm201 = vcmp.ge.f32.partialorder %v197, 0.0
  %vm202 = vcmp.ge.f32.partialorder %v198, 0.0
  %vm203 = vcmp.ge.f32.partialorder %v199, 0.0
  %vm204 = vcmp.ge.f32.partialorder %v200, 0.0
  %v205 = vmul.f32 %v197, 0.2
  %v206 = vmul.f32 %v198, 0.2
  %v207 = vmul.f32 %v199, 0.2
  %v208 = vmul.f32 %v200, 0.2
  %v209 = vsel %vm201, %v197, %v205
  %v210 = vsel %vm202, %v198, %v206
  %v211 = vsel %vm203, %v199, %v207
  %v212 = vsel %vm204, %v200, %v208
  %v213 = vrot.slane %v209, 7
  %v214 = vrot.slane %v210, 7
  %v215 = vrot.slane %v211, 7
  %v216 = vrot.slane %v212, 7
  %vm217 = vcmp.lt.s32.totalorder %v28, 1
  %v218 = vsel %vm217, %v215, %v216
  %v219 = vsel %vm217, %v214, %v215
  %v220 = vsel %vm217, %v213, %v214
  %v221 = vsel %vm217, %v216, %v213
  %v222 = vsel %vm80, 1, 0
  %v223 = vsel %vm81, 1, 0
  %v224 = vsel %vm82, 1, 0
  %v225 = vsel %vm83, 1, 0
  %vm226 = vcmp.eq.s32.totalorder %v222, 1
  %vm227 = vcmp.eq.s32.totalorder %v223, 1
  %vm228 = vcmp.eq.s32.totalorder %v224, 1
  %vm229 = vcmp.eq.s32.totalorder %v225, 1
  %v230 = vsel %vm226, 0.0, %v221
  %v231 = vsel %vm227, 0.0, %v220
  %v232 = vsel %vm228, 0.0, %v219
  %v233 = vsel %vm229, 0.0, %v218
  %v234 = vrot.slane %v209, 1
  %v235 = vrot.slane %v210, 1
  %v236 = vrot.slane %v211, 1
  %v237 = vrot.slane %v212, 1
  %vm238 = vcmp.lt.s32.totalorder %v28, 7
  %v239 = vsel %vm238, %v236, %v237
  %v240 = vsel %vm238, %v235, %v236
  %v241 = vsel %vm238, %v234, %v235
  %v242 = vsel %vm238, %v237, %v234
  %v243 = vsel %vm84, 1, 0
  %v244 = vsel %vm85, 1, 0
  %v245 = vsel %vm86, 1, 0
  %v246 = vsel %vm87, 1, 0
  %vm247 = vcmp.eq.s32.totalorder %v243, 1
  %vm248 = vcmp.eq.s32.totalorder %v244, 1
  %vm249 = vcmp.eq.s32.totalorder %v245, 1
  %vm250 = vcmp.eq.s32.totalorder %v246, 1
  %v251 = vsel %vm247, 0.0, %v241
  %v252 = vsel %vm248, 0.0, %v240
  %v253 = vsel %vm249, 0.0, %v239
  %v254 = vsel %vm250, 0.0, %v242
  %259 = vrot.lane.b32.xlu0 %v209, 64
  %v260 = vpop.permute.xlu0 %259
  %261 = vrot.lane.b32.xlu0 %v210, 64
  %v262 = vpop.permute.xlu0 %261
  %263 = vrot.lane.b32.xlu0 %v211, 64
  %v264 = vpop.permute.xlu0 %263
  %265 = vrot.lane.b32.xlu0 %v212, 64
  %v266 = vpop.permute.xlu0 %265
  %v271 = vsel %vm141, %v230, %v260
  %v272 = vsel %vm141, %v231, %v262
  %v273 = vsel %vm141, %v232, %v264
  %v274 = vsel %vm141, %v233, %v266
  %v275 = vpack.c.bf16 %v272, %v271
  %v276 = vpack.c.bf16 %v252, %v251
  %v277 = vpack.c.bf16 %v274, %v273
  %v278 = vpack.c.bf16 %v254, %v253
  %v279 = vld [vmem:[%s1] sm:$0xf]
  %v280 = vld [vmem:[%s1 + $0x4] sm:$0xf]
  %v281 = vld [vmem:[%s1 + $0x8] sm:$0xf]
  %v282 = vld [vmem:[%s1 + $0xc] sm:$0xf]
  %v283 = vld [vmem:[%s1 + $0x10] sm:$0xf]
  %v284 = vld [vmem:[%s1 + $0x14] sm:$0xf]
  %v285 = vld [vmem:[%s1 + $0x18] sm:$0xf]
  %v286 = vld [vmem:[%s1 + $0x1c] sm:$0xf]
  %v287 = vld [vmem:[%s1 + $0x20] sm:$0xf]
  %v288 = vld [vmem:[%s1 + $0x24] sm:$0xf]
  %v289 = vld [vmem:[%s1 + $0x28] sm:$0xf]
  %v290 = vld [vmem:[%s1 + $0x2c] sm:$0xf]
  %v291 = vld [vmem:[%s1 + $0x30] sm:$0xf]
  %v292 = vld [vmem:[%s1 + $0x34] sm:$0xf]
  %v293 = vld [vmem:[%s1 + $0x38] sm:$0xf]
  %v294 = vld [vmem:[%s1 + $0x3c] sm:$0xf]
  %v295 = vld [vmem:[%s1 + $0x40] sm:$0xf]
  %v296 = vld [vmem:[%s1 + $0x44] sm:$0xf]
  %v297 = vld [vmem:[%s1 + $0x48] sm:$0xf]
  %v298 = vld [vmem:[%s1 + $0x4c] sm:$0xf]
  %v299 = vld [vmem:[%s1 + $0x50] sm:$0xf]
  %v300 = vld [vmem:[%s1 + $0x54] sm:$0xf]
  %v301 = vld [vmem:[%s1 + $0x58] sm:$0xf]
  %v302 = vld [vmem:[%s1 + $0x5c] sm:$0xf]
  %v303 = vld [vmem:[%s2] sm:$0x1]
  %v305 = vlaneseq
  %v306 = vshrl.u32 %v305, 7
  %v307 = vsub.s32 0, %v306
  %v308 = vrot.slane %v303, %v307
  %v334 = vunpack.c.l.b16 %v279
  %v335 = vunpack.c.l.b16 %v280
  %v336 = vunpack.c.l.b16 %v281
  %v337 = vunpack.c.l.b16 %v282
  %v338 = vunpack.c.l.b16 %v283
  %v339 = vunpack.c.l.b16 %v284
  %v340 = vunpack.c.l.b16 %v285
  %v341 = vunpack.c.l.b16 %v286
  %v342 = vunpack.c.l.b16 %v287
  %v343 = vunpack.c.l.b16 %v288
  %v344 = vunpack.c.l.b16 %v289
  %v345 = vunpack.c.l.b16 %v290
  %v346 = vunpack.c.l.b16 %v291
  %v347 = vunpack.c.l.b16 %v292
  %v348 = vunpack.c.l.b16 %v293
  %v349 = vunpack.c.l.b16 %v294
  %v350 = vunpack.c.l.b16 %v295
  %v351 = vunpack.c.l.b16 %v296
  %v352 = vunpack.c.l.b16 %v297
  %v353 = vunpack.c.l.b16 %v298
  %v354 = vunpack.c.l.b16 %v299
  %v355 = vunpack.c.l.b16 %v300
  %v356 = vunpack.c.l.b16 %v301
  %v357 = vunpack.c.l.b16 %v302
  %v358 = vpack.c.b16 %v335, %v334
  %v359 = vpack.c.b16 %v337, %v336
  %v360 = vpack.c.b16 %v339, %v338
  %v361 = vpack.c.b16 %v341, %v340
  %v362 = vpack.c.b16 %v343, %v342
  %v363 = vpack.c.b16 %v345, %v344
  %v364 = vpack.c.b16 %v347, %v346
  %v365 = vpack.c.b16 %v349, %v348
  %v366 = vpack.c.b16 %v351, %v350
  %v367 = vpack.c.b16 %v353, %v352
  %v368 = vpack.c.b16 %v355, %v354
  %v369 = vpack.c.b16 %v357, %v356
  %v383 = vsel %vm141, %v276, 0
  %v386 = vsel %vm141, %v278, 0
  %388 = vmatprep.subr.bf16.mxu0 0
  %389 = vmatpush1.bf16.msra.mxu0 %v358
  %390 = vmatprep.subr.bf16.mxu0 0
  %391 = vmatpush1.bf16.msra.mxu0 %v359
  %392 = vmatprep.subr.bf16.mxu0 0
  %393 = vmatpush1.bf16.msra.mxu0 %v360
  %394 = vmatprep.subr.bf16.mxu0 0
  %395 = vmatpush1.bf16.msra.mxu0 %v361
  %396 = vmatprep.subr.bf16.mxu0 0
  %397 = vmatpush1.bf16.msra.mxu0 %v362
  %398 = vmatprep.subr.bf16.mxu0 0
  %399 = vmatpush1.bf16.msra.mxu0 %v363
  %400 = vmatprep.subr.bf16.mxu0 0
  %401 = vmatpush1.bf16.msra.mxu0 %v364
  %402 = vmatprep.subr.bf16.mxu0 0
  %403 = vmatpush1.bf16.msra.mxu0 %v365
  %404 = vmatprep.subr.bf16.mxu0 0
  %405 = vmatpush1.bf16.msra.mxu0 %v366
  %406 = vmatprep.subr.bf16.mxu0 0
  %407 = vmatpush1.bf16.msra.mxu0 %v367
  %408 = vmatprep.subr.bf16.mxu0 0
  %409 = vmatpush1.bf16.msra.mxu0 %v368
  %410 = vmatprep.subr.bf16.mxu0 0
  %411 = vmatpush1.bf16.msra.mxu0 %v369
  %412 = vmatprep.subr.bf16.mxu0 0
  %413 = vmatpush1.bf16.msra.mxu0 0
  %414 = vmatprep.subr.bf16.mxu0 0
  %415 = vmatpush1.bf16.msra.mxu0 0
  %416 = vmatprep.subr.bf16.mxu0 0
  %417 = vmatpush1.bf16.msra.mxu0 0
  %418 = vmatprep.subr.bf16.mxu0 0
  %419 = vmatpush1.bf16.msra.mxu0 0
  %420 = vmatprep.mubr.bf16.mxu0 %v383
  %421 = vmatmul.mubr.bf16.gmra.mrb[0].mxu0 %v275
  %v422 = vpop.f32.mrb[0].mxu0
  %v423 = vadd.f32 %v308, %v422
  %v424 = vpop.f32.mrb[0].mxu0
  %v425 = vpop.f32.mrb[0].mxu0
  %v426 = vadd.f32 %v308, %v425
  %v427 = vpop.f32.mrb[0].mxu0
  %428 = vmatprep.mubr.bf16.mxu0 %v386
  %429 = vmatmul.mubr.bf16.gmra.mrb[0].mxu0 %v277
  %v430 = vpop.f32.mrb[0].mxu0
  %v431 = vadd.f32 %v308, %v430
  %v432 = vpop.f32.mrb[0].mxu0
  %v433 = vpop.f32.mrb[0].mxu0
  %v434 = vadd.f32 %v308, %v433
  %v435 = vpop.f32.mrb[0].mxu0
  %436 = vdwg.mxu0
  %vm437 = vcmp.ge.f32.partialorder %v423, 0.0
  %vm438 = vcmp.ge.f32.partialorder %v426, 0.0
  %vm439 = vcmp.ge.f32.partialorder %v431, 0.0
  %vm440 = vcmp.ge.f32.partialorder %v434, 0.0
  %v441 = vmul.f32 %v423, 0.2
  %v442 = vmul.f32 %v426, 0.2
  %v443 = vmul.f32 %v431, 0.2
  %v444 = vmul.f32 %v434, 0.2
  %v445 = vsel %vm437, %v423, %v441
  %v446 = vsel %vm438, %v426, %v442
  %v447 = vsel %vm439, %v431, %v443
  %v448 = vsel %vm440, %v434, %v444
  %v449 = vrot.slane %v445, 7
  %v450 = vrot.slane %v446, 7
  %v451 = vrot.slane %v447, 7
  %v452 = vrot.slane %v448, 7
  %v453 = vsel %vm217, %v451, %v452
  %v454 = vsel %vm217, %v450, %v451
  %v455 = vsel %vm217, %v449, %v450
  %v456 = vsel %vm217, %v452, %v449
  %v457 = vsel %vm226, 0.0, %v456
  %v458 = vsel %vm227, 0.0, %v455
  %v459 = vsel %vm228, 0.0, %v454
  %v460 = vsel %vm229, 0.0, %v453
  %v461 = vrot.slane %v445, 1
  %v462 = vrot.slane %v446, 1
  %v463 = vrot.slane %v447, 1
  %v464 = vrot.slane %v448, 1
  %v465 = vsel %vm238, %v463, %v464
  %v466 = vsel %vm238, %v462, %v463
  %v467 = vsel %vm238, %v461, %v462
  %v468 = vsel %vm238, %v464, %v461
  %v469 = vsel %vm247, 0.0, %v467
  %v470 = vsel %vm248, 0.0, %v466
  %v471 = vsel %vm249, 0.0, %v465
  %v472 = vsel %vm250, 0.0, %v468
  %v473 = vpack.c.bf16 %v458, %v457
  %v474 = vpack.c.bf16 %v446, %v445
  %v475 = vpack.c.bf16 %v470, %v469
  %v476 = vpack.c.bf16 %v460, %v459
  %v477 = vpack.c.bf16 %v448, %v447
  %v478 = vpack.c.bf16 %v472, %v471
  %v479 = vld [vmem:[%s3] sm:$0xf]
  %v480 = vld [vmem:[%s3 + $0x4] sm:$0xf]
  %v481 = vld [vmem:[%s3 + $0x8] sm:$0xf]
  %v482 = vld [vmem:[%s3 + $0xc] sm:$0xf]
  %v483 = vld [vmem:[%s3 + $0x10] sm:$0xf]
  %v484 = vld [vmem:[%s3 + $0x14] sm:$0xf]
  %v485 = vld [vmem:[%s3 + $0x18] sm:$0xf]
  %v486 = vld [vmem:[%s3 + $0x1c] sm:$0xf]
  %v487 = vld [vmem:[%s3 + $0x20] sm:$0xf]
  %v488 = vld [vmem:[%s3 + $0x24] sm:$0xf]
  %v489 = vld [vmem:[%s3 + $0x28] sm:$0xf]
  %v490 = vld [vmem:[%s3 + $0x2c] sm:$0xf]
  %v491 = vld [vmem:[%s3 + $0x30] sm:$0xf]
  %v492 = vld [vmem:[%s3 + $0x34] sm:$0xf]
  %v493 = vld [vmem:[%s3 + $0x38] sm:$0xf]
  %v494 = vld [vmem:[%s3 + $0x3c] sm:$0xf]
  %v495 = vld [vmem:[%s3 + $0x40] sm:$0xf]
  %v496 = vld [vmem:[%s3 + $0x44] sm:$0xf]
  %v497 = vld [vmem:[%s3 + $0x48] sm:$0xf]
  %v498 = vld [vmem:[%s3 + $0x4c] sm:$0xf]
  %v499 = vld [vmem:[%s3 + $0x50] sm:$0xf]
  %v500 = vld [vmem:[%s3 + $0x54] sm:$0xf]
  %v501 = vld [vmem:[%s3 + $0x58] sm:$0xf]
  %v502 = vld [vmem:[%s3 + $0x5c] sm:$0xf]
  %v503 = vld [vmem:[%s3 + $0x60] sm:$0xf]
  %v504 = vld [vmem:[%s3 + $0x64] sm:$0xf]
  %v505 = vld [vmem:[%s3 + $0x68] sm:$0xf]
  %v506 = vld [vmem:[%s3 + $0x6c] sm:$0xf]
  %v507 = vld [vmem:[%s3 + $0x70] sm:$0xf]
  %v508 = vld [vmem:[%s3 + $0x74] sm:$0xf]
  %v509 = vld [vmem:[%s3 + $0x78] sm:$0xf]
  %v510 = vld [vmem:[%s3 + $0x7c] sm:$0xf]
  %v511 = vld [vmem:[%s3 + $0x80] sm:$0xf]
  %v512 = vld [vmem:[%s3 + $0x84] sm:$0xf]
  %v513 = vld [vmem:[%s3 + $0x88] sm:$0xf]
  %v514 = vld [vmem:[%s3 + $0x8c] sm:$0xf]
  %v515 = vld [vmem:[%s3 + $0x90] sm:$0xf]
  %v516 = vld [vmem:[%s3 + $0x94] sm:$0xf]
  %v517 = vld [vmem:[%s3 + $0x98] sm:$0xf]
  %v518 = vld [vmem:[%s3 + $0x9c] sm:$0xf]
  %v519 = vld [vmem:[%s3 + $0xa0] sm:$0xf]
  %v520 = vld [vmem:[%s3 + $0xa4] sm:$0xf]
  %v521 = vld [vmem:[%s3 + $0xa8] sm:$0xf]
  %v522 = vld [vmem:[%s3 + $0xac] sm:$0xf]
  %v523 = vld [vmem:[%s3 + $0xb0] sm:$0xf]
  %v524 = vld [vmem:[%s3 + $0xb4] sm:$0xf]
  %v525 = vld [vmem:[%s3 + $0xb8] sm:$0xf]
  %v526 = vld [vmem:[%s3 + $0xbc] sm:$0xf]
  %v527 = vld [vmem:[%s4] sm:$0x1]
  %v529 = vlaneseq
  %v530 = vshrl.u32 %v529, 7
  %v531 = vsub.s32 0, %v530
  %v532 = vrot.slane %v527, %v531
  %v582 = vunpack.c.l.b16 %v479
  %v583 = vunpack.c.l.b16 %v480
  %v584 = vunpack.c.l.b16 %v481
  %v585 = vunpack.c.l.b16 %v482
  %v586 = vunpack.c.l.b16 %v483
  %v587 = vunpack.c.l.b16 %v484
  %v588 = vunpack.c.l.b16 %v485
  %v589 = vunpack.c.l.b16 %v486
  %v590 = vunpack.c.l.b16 %v487
  %v591 = vunpack.c.l.b16 %v488
  %v592 = vunpack.c.l.b16 %v489
  %v593 = vunpack.c.l.b16 %v490
  %v594 = vunpack.c.l.b16 %v491
  %v595 = vunpack.c.l.b16 %v492
  %v596 = vunpack.c.l.b16 %v493
  %v597 = vunpack.c.l.b16 %v494
  %v598 = vunpack.c.l.b16 %v495
  %v599 = vunpack.c.l.b16 %v496
  %v600 = vunpack.c.l.b16 %v497
  %v601 = vunpack.c.l.b16 %v498
  %v602 = vunpack.c.l.b16 %v499
  %v603 = vunpack.c.l.b16 %v500
  %v604 = vunpack.c.l.b16 %v501
  %v605 = vunpack.c.l.b16 %v502
  %v606 = vunpack.c.l.b16 %v503
  %v607 = vunpack.c.l.b16 %v504
  %v608 = vunpack.c.l.b16 %v505
  %v609 = vunpack.c.l.b16 %v506
  %v610 = vunpack.c.l.b16 %v507
  %v611 = vunpack.c.l.b16 %v508
  %v612 = vunpack.c.l.b16 %v509
  %v613 = vunpack.c.l.b16 %v510
  %v614 = vunpack.c.l.b16 %v511
  %v615 = vunpack.c.l.b16 %v512
  %v616 = vunpack.c.l.b16 %v513
  %v617 = vunpack.c.l.b16 %v514
  %v618 = vunpack.c.l.b16 %v515
  %v619 = vunpack.c.l.b16 %v516
  %v620 = vunpack.c.l.b16 %v517
  %v621 = vunpack.c.l.b16 %v518
  %v622 = vunpack.c.l.b16 %v519
  %v623 = vunpack.c.l.b16 %v520
  %v624 = vunpack.c.l.b16 %v521
  %v625 = vunpack.c.l.b16 %v522
  %v626 = vunpack.c.l.b16 %v523
  %v627 = vunpack.c.l.b16 %v524
  %v628 = vunpack.c.l.b16 %v525
  %v629 = vunpack.c.l.b16 %v526
  %v630 = vpack.c.b16 %v583, %v582
  %v631 = vpack.c.b16 %v585, %v584
  %v632 = vpack.c.b16 %v587, %v586
  %v633 = vpack.c.b16 %v589, %v588
  %v634 = vpack.c.b16 %v591, %v590
  %v635 = vpack.c.b16 %v593, %v592
  %v636 = vpack.c.b16 %v595, %v594
  %v637 = vpack.c.b16 %v597, %v596
  %v638 = vpack.c.b16 %v599, %v598
  %v639 = vpack.c.b16 %v601, %v600
  %v640 = vpack.c.b16 %v603, %v602
  %v641 = vpack.c.b16 %v605, %v604
  %v642 = vpack.c.b16 %v607, %v606
  %v643 = vpack.c.b16 %v609, %v608
  %v644 = vpack.c.b16 %v611, %v610
  %v645 = vpack.c.b16 %v613, %v612
  %v646 = vpack.c.b16 %v615, %v614
  %v647 = vpack.c.b16 %v617, %v616
  %v648 = vpack.c.b16 %v619, %v618
  %v649 = vpack.c.b16 %v621, %v620
  %v650 = vpack.c.b16 %v623, %v622
  %v651 = vpack.c.b16 %v625, %v624
  %v652 = vpack.c.b16 %v627, %v626
  %v653 = vpack.c.b16 %v629, %v628
  %678 = vmatprep.subr.bf16.mxu0 0
  %679 = vmatpush1.bf16.msra.mxu0 %v630
  %680 = vmatprep.subr.bf16.mxu0 0
  %681 = vmatpush1.bf16.msra.mxu0 %v631
  %682 = vmatprep.subr.bf16.mxu0 0
  %683 = vmatpush1.bf16.msra.mxu0 %v632
  %684 = vmatprep.subr.bf16.mxu0 0
  %685 = vmatpush1.bf16.msra.mxu0 %v633
  %686 = vmatprep.subr.bf16.mxu0 0
  %687 = vmatpush1.bf16.msra.mxu0 %v634
  %688 = vmatprep.subr.bf16.mxu0 0
  %689 = vmatpush1.bf16.msra.mxu0 %v635
  %690 = vmatprep.subr.bf16.mxu0 0
  %691 = vmatpush1.bf16.msra.mxu0 %v636
  %692 = vmatprep.subr.bf16.mxu0 0
  %693 = vmatpush1.bf16.msra.mxu0 %v637
  %694 = vmatprep.subr.bf16.mxu0 0
  %695 = vmatpush1.bf16.msra.mxu0 %v638
  %696 = vmatprep.subr.bf16.mxu0 0
  %697 = vmatpush1.bf16.msra.mxu0 %v639
  %698 = vmatprep.subr.bf16.mxu0 0
  %699 = vmatpush1.bf16.msra.mxu0 %v640
  %700 = vmatprep.subr.bf16.mxu0 0
  %701 = vmatpush1.bf16.msra.mxu0 %v641
  %702 = vmatprep.subr.bf16.mxu0 0
  %703 = vmatpush1.bf16.msra.mxu0 %v642
  %704 = vmatprep.subr.bf16.mxu0 0
  %705 = vmatpush1.bf16.msra.mxu0 %v643
  %706 = vmatprep.subr.bf16.mxu0 0
  %707 = vmatpush1.bf16.msra.mxu0 %v644
  %708 = vmatprep.subr.bf16.mxu0 0
  %709 = vmatpush1.bf16.msra.mxu0 %v645
  %710 = vmatprep.mubr.bf16.mxu0 %v474
  %711 = vmatmul.mubr.bf16.gmra.mrb[0].mxu0 %v473
  %v712 = vpop.f32.mrb[0].mxu0
  %v713 = vadd.f32 %v532, %v712
  %v714 = vpop.f32.mrb[0].mxu0
  %v715 = vpop.f32.mrb[0].mxu0
  %v716 = vadd.f32 %v532, %v715
  %v717 = vpop.f32.mrb[0].mxu0
  %718 = vmatprep.mubr.bf16.mxu0 %v477
  %719 = vmatmul.mubr.bf16.gmra.mrb[0].mxu0 %v476
  %v720 = vpop.f32.mrb[0].mxu0
  %v721 = vadd.f32 %v532, %v720
  %v722 = vpop.f32.mrb[0].mxu0
  %v723 = vpop.f32.mrb[0].mxu0
  %v724 = vadd.f32 %v532, %v723
  %v725 = vpop.f32.mrb[0].mxu0
  %726 = vdwg.mxu0
  %727 = vmatprep.subr.bf16.mxu0 0
  %728 = vmatpush1.bf16.msra.mxu0 %v646
  %729 = vmatprep.subr.bf16.mxu0 0
  %730 = vmatpush1.bf16.msra.mxu0 %v647
  %731 = vmatprep.subr.bf16.mxu0 0
  %732 = vmatpush1.bf16.msra.mxu0 %v648
  %733 = vmatprep.subr.bf16.mxu0 0
  %734 = vmatpush1.bf16.msra.mxu0 %v649
  %735 = vmatprep.subr.bf16.mxu0 0
  %736 = vmatpush1.bf16.msra.mxu0 %v650
  %737 = vmatprep.subr.bf16.mxu0 0
  %738 = vmatpush1.bf16.msra.mxu0 %v651
  %739 = vmatprep.subr.bf16.mxu0 0
  %740 = vmatpush1.bf16.msra.mxu0 %v652
  %741 = vmatprep.subr.bf16.mxu0 0
  %742 = vmatpush1.bf16.msra.mxu0 %v653
  %743 = vmatprep.subr.bf16.mxu0 0
  %744 = vmatpush1.bf16.msra.mxu0 0
  %745 = vmatprep.subr.bf16.mxu0 0
  %746 = vmatpush1.bf16.msra.mxu0 0
  %747 = vmatprep.subr.bf16.mxu0 0
  %748 = vmatpush1.bf16.msra.mxu0 0
  %749 = vmatprep.subr.bf16.mxu0 0
  %750 = vmatpush1.bf16.msra.mxu0 0
  %751 = vmatprep.subr.bf16.mxu0 0
  %752 = vmatpush1.bf16.msra.mxu0 0
  %753 = vmatprep.subr.bf16.mxu0 0
  %754 = vmatpush1.bf16.msra.mxu0 0
  %755 = vmatprep.subr.bf16.mxu0 0
  %756 = vmatpush1.bf16.msra.mxu0 0
  %757 = vmatprep.subr.bf16.mxu0 0
  %758 = vmatpush1.bf16.msra.mxu0 0
  %759 = vmatprep.mubr.bf16.mxu0 0
  %760 = vmatmul.mubr.bf16.gmra.mrb[0].mxu0 %v475
  %v761 = vpop.f32.mrb[0].mxu0
  %v762 = vadd.f32 %v713, %v761
  %v763 = vpop.f32.mrb[0].mxu0
  %v764 = vpop.f32.mrb[0].mxu0
  %v765 = vadd.f32 %v716, %v764
  %v766 = vpop.f32.mrb[0].mxu0
  %767 = vmatprep.mubr.bf16.mxu0 0
  %768 = vmatmul.mubr.bf16.gmra.mrb[0].mxu0 %v478
  %v769 = vpop.f32.mrb[0].mxu0
  %v770 = vadd.f32 %v721, %v769
  %v771 = vpop.f32.mrb[0].mxu0
  %v772 = vpop.f32.mrb[0].mxu0
  %v773 = vadd.f32 %v724, %v772
  %v774 = vpop.f32.mrb[0].mxu0
  %775 = vdwg.mxu0
  %vm776 = vcmp.ge.f32.partialorder %v762, 0.0
  %vm777 = vcmp.ge.f32.partialorder %v765, 0.0
  %vm778 = vcmp.ge.f32.partialorder %v770, 0.0
  %vm779 = vcmp.ge.f32.partialorder %v773, 0.0
  %v780 = vmul.f32 %v762, 0.2
  %v781 = vmul.f32 %v765, 0.2
  %v782 = vmul.f32 %v770, 0.2
  %v783 = vmul.f32 %v773, 0.2
  %v784 = vsel %vm776, %v762, %v780
  %v785 = vsel %vm777, %v765, %v781
  %v786 = vsel %vm778, %v770, %v782
  %v787 = vsel %vm779, %v773, %v783
  %v788 = vadd.f32 %v183, %v784
  %v789 = vadd.f32 %v186, %v785
  %v790 = vadd.f32 %v191, %v786
  %v791 = vadd.f32 %v194, %v787
  %v792 = vpack.c.bf16 %v789, %v788
  %v793 = vpack.c.bf16 %v791, %v790
  %v796 = vunpack.c.l.b16 %v792
  %v797 = vunpack.c.h.b16 %v792
  %v798 = vunpack.c.l.b16 %v793
  %v799 = vunpack.c.h.b16 %v793
  %v800 = vpack.c.b16 %v796, %v796
  %v801 = vpack.c.b16 %v797, %v797
  %v802 = vpack.c.b16 %v798, %v798
  %v803 = vpack.c.b16 %v799, %v799
  %808 = vst [vmem:[%s7] sm:$0xf] %v800
  %809 = vst [vmem:[%s7 + $0x4] sm:$0xf] %v801
  %810 = vst [vmem:[%s7 + $0x8] sm:$0xf] %v802
  %811 = vst [vmem:[%s7 + $0xc] sm:$0xf] %v803
  // Predicated region
  $region30: #{resblock_pallas.1} parent=0 // pred_check
    _
  $region31: #{resblock_pallas.1} parent=0 // pred_check_branch
    %813 = sbr.rel (0) target = $region33
  $region32: #{resblock_pallas.1} parent=0 // pred_region
    _
  $region33: #{resblock_pallas.1} parent=0 // pred_fallthru
    _
  // Predicated region
  $region34: #{resblock_pallas.1} parent=0 // pred_check
    _
  $region35: #{resblock_pallas.1} parent=0 // pred_check_branch
    %815 = sbr.rel (0) target = $region37
  $region36: #{resblock_pallas.1} parent=0 // pred_region
    _
  $region37: #{resblock_pallas.1} parent=0 // pred_fallthru
    _

</llo_original>
